<compile_context>
chip_gen: v7x
topology: tpu7x:2x2x1
jax: 0.10.0
libtpu: 0.0.40
codegen_flags: <defaults>
</compile_context>

<pallas_src>
import functools

import jax
import jax.numpy as jnp
from jax.experimental import pallas as pl
from jax.experimental.pallas import tpu as pltpu


def _round_up(x: int, m: int) -> int:
    return ((x + m - 1) // m) * m


# ----------------------------------------------------------------------------
# Kernel
# ----------------------------------------------------------------------------
def _clas_policy_kernel(*refs, latent_dim, half, stochastic):
    if stochastic:
        (obs_ref, w1_ref, b1_ref, w2_ref, b2_ref,
         wh_ref, bh_ref, eps_ref, out_ref) = refs
    else:
        (obs_ref, w1_ref, b1_ref, w2_ref, b2_ref,
         wh_ref, bh_ref, out_ref) = refs

    bf16 = jnp.bfloat16

    # Linear -> ReLU -> Linear -> ReLU.  bf16 MXU operands, f32 accumulation,
    # f32 elementwise epilogue.
    x = obs_ref[...].astype(bf16)
    h = jnp.dot(x, w1_ref[...], preferred_element_type=jnp.float32) + b1_ref[...]
    h = jnp.maximum(h, 0.0)
    h = jnp.dot(h.astype(bf16), w2_ref[...],
                preferred_element_type=jnp.float32) + b2_ref[...]
    h = jnp.maximum(h, 0.0)

    # Single fused head matmul: mu at lanes [0:lat], logvar at [half:half+lat].
    heads = jnp.dot(h.astype(bf16), wh_ref[...],
                    preferred_element_type=jnp.float32) + bh_ref[...]
    mu = heads[:, :latent_dim]

    if stochastic:
        # Re-align logvar to lane 0 via an XLU rotation (no VALU cost).
        logvar = pltpu.roll(heads, shift=half, axis=1)[:, :latent_dim]
        std = jnp.exp(0.5 * logvar)
        pre_tanh = mu + eps_ref[...] * std
    else:
        pre_tanh = mu

    out_ref[...] = jnp.tanh(pre_tanh).astype(out_ref.dtype)


# ----------------------------------------------------------------------------
# One-time parameter preparation (pad hidden dim, fuse + pack heads, bf16 cast)
# ----------------------------------------------------------------------------
def prepare_params(params):
    """Call ONCE (e.g. at init / after each optimizer step), not per forward."""
    obs_dim, hidden_dim = params["w1"].shape
    latent_dim = params["wmu"].shape[1]

    hid_pad = _round_up(hidden_dim, 128)
    half = 64 if latent_dim <= 64 else _round_up(latent_dim, 128)
    head_w = 2 * half

    f32, bf16 = jnp.float32, jnp.bfloat16

    w1 = jnp.zeros((obs_dim, hid_pad), f32).at[:, :hidden_dim].set(params["w1"]).astype(bf16)
    b1 = jnp.zeros((1, hid_pad), f32).at[:, :hidden_dim].set(params["b1"])
    w2 = jnp.zeros((hid_pad, hid_pad), f32).at[:hidden_dim, :hidden_dim].set(params["w2"]).astype(bf16)
    b2 = jnp.zeros((1, hid_pad), f32).at[:, :hidden_dim].set(params["b2"])

    wh = jnp.zeros((hid_pad, head_w), f32)
    wh = wh.at[:hidden_dim, :latent_dim].set(params["wmu"])
    wh = wh.at[:hidden_dim, half:half + latent_dim].set(params["wlv"])
    wh = wh.astype(bf16)
    bh = jnp.zeros((1, head_w), f32)
    bh = bh.at[:, :latent_dim].set(params["bmu"])
    bh = bh.at[:, half:half + latent_dim].set(params["blv"])

    return {"w1": w1, "b1": b1, "w2": w2, "b2": b2, "wh": wh, "bh": bh}


# ----------------------------------------------------------------------------
# Forward wrapper
# ----------------------------------------------------------------------------
def clas_policy_forward(shared_obs, prep, eps=None, *, latent_dim=None,
                        batch_tile=512):
    """CLASPolicy forward pass.

    shared_obs: [B, obs_dim] float32
    prep:       output of prepare_params (padded/fused/bf16 weights)
    eps:        [B, latent_dim] float32 standard-normal noise, or None for the
                deterministic path (pre_tanh = mu).
    """
    shared_obs = shared_obs.astype(jnp.float32)
    B, obs_dim = shared_obs.shape
    hid_pad = prep["w1"].shape[1]
    head_w = prep["wh"].shape[1]
    half = head_w // 2

    stochastic = eps is not None
    if stochastic:
        eps = eps.astype(jnp.float32)
        latent_dim = eps.shape[1]
    assert latent_dim is not None, "pass eps or latent_dim"
    assert latent_dim <= half

    # Batch tiling: >=2 grid steps when possible (feeds both v7x TensorCores),
    # capped at batch_tile rows; ragged batches use a masked boundary block.
    if B <= 8:
        bt = 8
    else:
        bt = min(_round_up(batch_tile, 8), _round_up(pl.cdiv(B, 2), 8))
    grid = (pl.cdiv(B, bt),)

    row_map = lambda i: (i, 0)   # batch-tiled arrays
    rep_map = lambda i: (0, 0)   # weights: resident in VMEM across the grid

    in_specs = [
        pl.BlockSpec((bt, obs_dim), row_map),        # obs (unpadded)
        pl.BlockSpec((obs_dim, hid_pad), rep_map),   # w1 (bf16)
        pl.BlockSpec((1, hid_pad), rep_map),         # b1
        pl.BlockSpec((hid_pad, hid_pad), rep_map),   # w2 (bf16)
        pl.BlockSpec((1, hid_pad), rep_map),         # b2
        pl.BlockSpec((hid_pad, head_w), rep_map),    # fused/packed head weight
        pl.BlockSpec((1, head_w), rep_map),          # fused/packed head bias
    ]
    args = [shared_obs, prep["w1"], prep["b1"], prep["w2"], prep["b2"],
            prep["wh"], prep["bh"]]
    if stochastic:
        in_specs.append(pl.BlockSpec((bt, latent_dim), row_map))  # eps (unpadded)
        args.append(eps)

    out_spec = pl.BlockSpec((bt, latent_dim), row_map)

    flops = 2 * B * (obs_dim * hid_pad + hid_pad * hid_pad + hid_pad * head_w)
    transcendentals = (2 if stochastic else 1) * B * latent_dim
    bytes_accessed = (4 * B * (obs_dim + (2 if stochastic else 1) * latent_dim)
                      + 2 * (obs_dim * hid_pad + hid_pad * hid_pad + hid_pad * head_w)
                      + 4 * (2 * hid_pad + head_w))

    out = pl.pallas_call(
        functools.partial(_clas_policy_kernel, latent_dim=latent_dim,
                          half=half, stochastic=stochastic),
        out_shape=jax.ShapeDtypeStruct((B, latent_dim), jnp.float32),
        grid=grid,
        in_specs=in_specs,
        out_specs=out_spec,
        compiler_params=pltpu.CompilerParams(
            dimension_semantics=("parallel",),
            vmem_limit_bytes=32 * 1024 * 1024),
        cost_estimate=pl.CostEstimate(
            flops=flops,
            transcendentals=transcendentals,
            bytes_accessed=bytes_accessed),
    )(*args)

    return out


# ----------------------------------------------------------------------------
# Parameter init + references
# ----------------------------------------------------------------------------
def init_params(key, shared_obs_dim, latent_dim, hidden_dim=256):
    """Deterministic synthetic parameters, stored already transposed: [in, out]."""
    ks = jax.random.split(key, 8)
    scale = 0.1
    return {
        "w1": scale * jax.random.normal(ks[0], (shared_obs_dim, hidden_dim), jnp.float32),
        "b1": scale * jax.random.normal(ks[1], (1, hidden_dim), jnp.float32),
        "w2": scale * jax.random.normal(ks[2], (hidden_dim, hidden_dim), jnp.float32),
        "b2": scale * jax.random.normal(ks[3], (1, hidden_dim), jnp.float32),
        "wmu": scale * jax.random.normal(ks[4], (hidden_dim, latent_dim), jnp.float32),
        "bmu": scale * jax.random.normal(ks[5], (1, latent_dim), jnp.float32),
        "wlv": scale * jax.random.normal(ks[6], (hidden_dim, latent_dim), jnp.float32),
        "blv": scale * jax.random.normal(ks[7], (1, latent_dim), jnp.float32),
    }


def reference_forward(shared_obs, params, eps=None):
    """Pure-JAX f32 reference mirroring the PyTorch module (no logvar clamp)."""
    hp = jax.lax.Precision.HIGHEST
    h = jnp.maximum(jnp.dot(shared_obs, params["w1"], precision=hp) + params["b1"], 0.0)
    h = jnp.maximum(jnp.dot(h, params["w2"], precision=hp) + params["b2"], 0.0)
    mu = jnp.dot(h, params["wmu"], precision=hp) + params["bmu"]
    if eps is None:
        pre_tanh = mu
    else:
        logvar = jnp.dot(h, params["wlv"], precision=hp) + params["blv"]
        pre_tanh = mu + eps * jnp.exp(0.5 * logvar)
    return jnp.tanh(pre_tanh)


def reference_forward_bf16(shared_obs, params, eps=None):
    """Reference with the kernel's numerics (bf16 MXU operands, f32 accumulate)."""
    bf16 = jnp.bfloat16

    def mm(x, w):
        return jnp.dot(x.astype(bf16), w.astype(bf16),
                       preferred_element_type=jnp.float32)

    h = jnp.maximum(mm(shared_obs, params["w1"]) + params["b1"], 0.0)
    h = jnp.maximum(mm(h, params["w2"]) + params["b2"], 0.0)
    mu = mm(h, params["wmu"]) + params["bmu"]
    if eps is None:
        pre_tanh = mu
    else:
        logvar = mm(h, params["wlv"]) + params["blv"]
        pre_tanh = mu + eps * jnp.exp(0.5 * logvar)
    return jnp.tanh(pre_tanh)


# ----------------------------------------------------------------------------
if __name__ == "__main__":
    key = jax.random.PRNGKey(0)
    k_param, k_obs, k_eps = jax.random.split(key, 3)

    batch = 64
    shared_obs_dim = 32
    hidden_dim = 256          # module default
    latent_dim = 8

    params = init_params(k_param, shared_obs_dim, latent_dim, hidden_dim)
    prep = prepare_params(params)   # one-time padding / fusion / bf16 cast
    shared_obs = jax.random.normal(k_obs, (batch, shared_obs_dim), jnp.float32)

    # Stochastic path: eps ~ N(0,1) generated outside the kernel for exact
    # parity with the reference.
    eps = jax.random.normal(k_eps, (batch, latent_dim), jnp.float32)

    out = jax.block_until_ready(clas_policy_forward(shared_obs, prep, eps))
    ref32 = reference_forward(shared_obs, params, eps)
    refbf = reference_forward_bf16(shared_obs, params, eps)
    assert out.shape == (batch, latent_dim)
    assert jnp.allclose(out, refbf, atol=1e-3, rtol=1e-3), \
        float(jnp.max(jnp.abs(out - refbf)))
    assert jnp.allclose(out, ref32, atol=5e-2, rtol=5e-2), \
        float(jnp.max(jnp.abs(out - ref32)))

    # Deterministic mode (no eps input at all -> pre_tanh = mu).
    out_det = jax.block_until_ready(
        clas_policy_forward(shared_obs, prep, None, latent_dim=latent_dim))
    refbf_det = reference_forward_bf16(shared_obs, params, None)
    ref32_det = reference_forward(shared_obs, params, None)
    assert jnp.allclose(out_det, refbf_det, atol=1e-3, rtol=1e-3)
    assert jnp.allclose(out_det, ref32_det, atol=5e-2, rtol=5e-2)

    # Ragged batch (exercises masked boundary block, no padded batch copy).
    out_r = jax.block_until_ready(
        clas_policy_forward(shared_obs[:20], prep, eps[:20]))
    assert out_r.shape == (20, latent_dim)
    assert jnp.allclose(out_r, refbf[:20], atol=1e-3, rtol=1e-3)

    print("KERNEL_OK")
</pallas_src>

<mosaic_0001>
module attributes {stable_mosaic.version = 11 : i64} {
  func.func @_clas_policy_kernel(%arg0: i32, %arg1: memref<32x32xf32, #tpu.memory_space<vmem>>, %arg2: memref<32x256xbf16, #tpu.memory_space<vmem>>, %arg3: memref<1x256xf32, #tpu.memory_space<vmem>>, %arg4: memref<256x256xbf16, #tpu.memory_space<vmem>>, %arg5: memref<1x256xf32, #tpu.memory_space<vmem>>, %arg6: memref<256x128xbf16, #tpu.memory_space<vmem>>, %arg7: memref<1x128xf32, #tpu.memory_space<vmem>>, %arg8: memref<32x8xf32, #tpu.memory_space<vmem>>, %arg9: memref<32x8xf32, #tpu.memory_space<vmem>>) attributes {dimension_semantics = [#tpu.dimension_semantics<parallel>], iteration_bounds = array<i64: 2>, scalar_prefetch = 0 : i64, scratch_operands = 0 : i64, tpu.core_type = #tpu.core_type<tc>, window_params = [{transform_indices = @transform_0, window_bounds = array<i64: 32, 32>}, {pipeline_mode = #tpu.pipeline_mode<synchronous>, transform_indices = @transform_1, window_bounds = array<i64: 32, 256>}, {pipeline_mode = #tpu.pipeline_mode<synchronous>, transform_indices = @transform_2, window_bounds = array<i64: 1, 256>}, {pipeline_mode = #tpu.pipeline_mode<synchronous>, transform_indices = @transform_3, window_bounds = array<i64: 256, 256>}, {pipeline_mode = #tpu.pipeline_mode<synchronous>, transform_indices = @transform_4, window_bounds = array<i64: 1, 256>}, {pipeline_mode = #tpu.pipeline_mode<synchronous>, transform_indices = @transform_5, window_bounds = array<i64: 256, 128>}, {pipeline_mode = #tpu.pipeline_mode<synchronous>, transform_indices = @transform_6, window_bounds = array<i64: 1, 128>}, {transform_indices = @transform_7, window_bounds = array<i64: 32, 8>}, {transform_indices = @transform_8, window_bounds = array<i64: 32, 8>}]} {
    %c0 = arith.constant 0 : index
    %c0_0 = arith.constant 0 : index
    %0 = vector.load %arg1[%c0, %c0_0] : memref<32x32xf32, #tpu.memory_space<vmem>>, vector<32x32xf32>
    %1 = arith.truncf %0 : vector<32x32xf32> to vector<32x32xbf16>
    %c0_1 = arith.constant 0 : index
    %c0_2 = arith.constant 0 : index
    %2 = vector.load %arg2[%c0_1, %c0_2] : memref<32x256xbf16, #tpu.memory_space<vmem>>, vector<32x256xbf16>
    %cst = arith.constant dense<0.000000e+00> : vector<32x256xf32>
    %3 = tpu.matmul %1, %2, %cst {dimension_numbers = #tpu.dot_dimension_numbers<[1], [0], [0], [1], [0, 0, 1, 1], [], []>} : vector<32x32xbf16>, vector<32x256xbf16>, vector<32x256xf32> -> vector<32x256xf32>
    %c0_3 = arith.constant 0 : index
    %c0_4 = arith.constant 0 : index
    %4 = vector.load %arg3[%c0_3, %c0_4] : memref<1x256xf32, #tpu.memory_space<vmem>>, vector<1x256xf32>
    %5 = vector.broadcast %4 : vector<1x256xf32> to vector<32x256xf32>
    %6 = arith.addf %3, %5 : vector<32x256xf32>
    %cst_5 = arith.constant 0.000000e+00 : f32
    %7 = vector.broadcast %cst_5 : f32 to vector<32x256xf32>
    %8 = arith.maximumf %6, %7 : vector<32x256xf32>
    %9 = arith.truncf %8 : vector<32x256xf32> to vector<32x256xbf16>
    %c0_6 = arith.constant 0 : index
    %c0_7 = arith.constant 0 : index
    %10 = vector.load %arg4[%c0_6, %c0_7] : memref<256x256xbf16, #tpu.memory_space<vmem>>, vector<256x256xbf16>
    %cst_8 = arith.constant dense<0.000000e+00> : vector<32x256xf32>
    %11 = tpu.matmul %9, %10, %cst_8 {dimension_numbers = #tpu.dot_dimension_numbers<[1], [0], [0], [1], [0, 0, 1, 1], [], []>} : vector<32x256xbf16>, vector<256x256xbf16>, vector<32x256xf32> -> vector<32x256xf32>
    %c0_9 = arith.constant 0 : index
    %c0_10 = arith.constant 0 : index
    %12 = vector.load %arg5[%c0_9, %c0_10] : memref<1x256xf32, #tpu.memory_space<vmem>>, vector<1x256xf32>
    %13 = vector.broadcast %12 : vector<1x256xf32> to vector<32x256xf32>
    %14 = arith.addf %11, %13 : vector<32x256xf32>
    %cst_11 = arith.constant 0.000000e+00 : f32
    %15 = vector.broadcast %cst_11 : f32 to vector<32x256xf32>
    %16 = arith.maximumf %14, %15 : vector<32x256xf32>
    %17 = arith.truncf %16 : vector<32x256xf32> to vector<32x256xbf16>
    %c0_12 = arith.constant 0 : index
    %c0_13 = arith.constant 0 : index
    %18 = vector.load %arg6[%c0_12, %c0_13] : memref<256x128xbf16, #tpu.memory_space<vmem>>, vector<256x128xbf16>
    %cst_14 = arith.constant dense<0.000000e+00> : vector<32x128xf32>
    %19 = tpu.matmul %17, %18, %cst_14 {dimension_numbers = #tpu.dot_dimension_numbers<[1], [0], [0], [1], [0, 0, 1, 1], [], []>} : vector<32x256xbf16>, vector<256x128xbf16>, vector<32x128xf32> -> vector<32x128xf32>
    %c0_15 = arith.constant 0 : index
    %c0_16 = arith.constant 0 : index
    %20 = vector.load %arg7[%c0_15, %c0_16] : memref<1x128xf32, #tpu.memory_space<vmem>>, vector<1x128xf32>
    %21 = vector.broadcast %20 : vector<1x128xf32> to vector<32x128xf32>
    %22 = arith.addf %19, %21 : vector<32x128xf32>
    %23 = vector.extract_strided_slice %22 {offsets = [0, 0], sizes = [32, 8], strides = [1, 1]} : vector<32x128xf32> to vector<32x8xf32>
    %c64_i32 = arith.constant 64 : i32
    %24 = tpu.dynamic_rotate %22 by %c64_i32 dim 1 : vector<32x128xf32>, i32 -> vector<32x128xf32>
    %25 = vector.extract_strided_slice %24 {offsets = [0, 0], sizes = [32, 8], strides = [1, 1]} : vector<32x128xf32> to vector<32x8xf32>
    %cst_17 = arith.constant 5.000000e-01 : f32
    %26 = vector.broadcast %cst_17 : f32 to vector<32x8xf32>
    %27 = arith.mulf %26, %25 : vector<32x8xf32>
    %28 = math.exp %27 : vector<32x8xf32>
    %c0_18 = arith.constant 0 : index
    %c0_19 = arith.constant 0 : index
    %29 = vector.load %arg8[%c0_18, %c0_19] : memref<32x8xf32, #tpu.memory_space<vmem>>, vector<32x8xf32>
    %30 = arith.mulf %29, %28 : vector<32x8xf32>
    %31 = arith.addf %23, %30 : vector<32x8xf32>
    %32 = math.tanh %31 : vector<32x8xf32>
    %c0_20 = arith.constant 0 : index
    %c0_21 = arith.constant 0 : index
    %33 = vector.load %arg9[%c0_20, %c0_21] : memref<32x8xf32, #tpu.memory_space<vmem>>, vector<32x8xf32>
    tpu.vector_store %arg9[%c0_20, %c0_21], %32 {strides = array<i32>} : memref<32x8xf32, #tpu.memory_space<vmem>>, vector<32x8xf32>,
    return
  }
  func.func @transform_0(%arg0: i32) -> (i32, i32) {
    %c0_i32 = arith.constant 0 : i32
    %c0_i32_0 = arith.constant 0 : i32
    return %arg0, %c0_i32 : i32, i32
  }
  func.func @transform_1(%arg0: i32) -> (i32, i32) {
    %c0_i32 = arith.constant 0 : i32
    %c0_i32_0 = arith.constant 0 : i32
    %c0_i32_1 = arith.constant 0 : i32
    return %c0_i32, %c0_i32_0 : i32, i32
  }
  func.func @transform_2(%arg0: i32) -> (i32, i32) {
    %c0_i32 = arith.constant 0 : i32
    %c0_i32_0 = arith.constant 0 : i32
    %c0_i32_1 = arith.constant 0 : i32
    return %c0_i32, %c0_i32_0 : i32, i32
  }
  func.func @transform_3(%arg0: i32) -> (i32, i32) {
    %c0_i32 = arith.constant 0 : i32
    %c0_i32_0 = arith.constant 0 : i32
    %c0_i32_1 = arith.constant 0 : i32
    return %c0_i32, %c0_i32_0 : i32, i32
  }
  func.func @transform_4(%arg0: i32) -> (i32, i32) {
    %c0_i32 = arith.constant 0 : i32
    %c0_i32_0 = arith.constant 0 : i32
    %c0_i32_1 = arith.constant 0 : i32
    return %c0_i32, %c0_i32_0 : i32, i32
  }
  func.func @transform_5(%arg0: i32) -> (i32, i32) {
    %c0_i32 = arith.constant 0 : i32
    %c0_i32_0 = arith.constant 0 : i32
    %c0_i32_1 = arith.constant 0 : i32
    return %c0_i32, %c0_i32_0 : i32, i32
  }
  func.func @transform_6(%arg0: i32) -> (i32, i32) {
    %c0_i32 = arith.constant 0 : i32
    %c0_i32_0 = arith.constant 0 : i32
    %c0_i32_1 = arith.constant 0 : i32
    return %c0_i32, %c0_i32_0 : i32, i32
  }
  func.func @transform_7(%arg0: i32) -> (i32, i32) {
    %c0_i32 = arith.constant 0 : i32
    %c0_i32_0 = arith.constant 0 : i32
    return %arg0, %c0_i32 : i32, i32
  }
  func.func @transform_8(%arg0: i32) -> (i32, i32) {
    %c0_i32 = arith.constant 0 : i32
    %c0_i32_0 = arith.constant 0 : i32
    return %arg0, %c0_i32 : i32, i32
  }
}

</mosaic_0001>

<llo_original>
// kernel: tpu_custom_call.1
$region0: #{tpu_custom_call.1}
  #allocation0 [shape = 'u32[]', space=smem, size = 0x4, offset = 0x4, fixed_abs, tag = 'smem constant byte address 0x4 - core index']
  #allocation1 [shape = 'u32[144,128]{1,0:T(1,128)}', space=vmem, size = 0x12000, scoped, tag = 'internal scratch']
  %s0 = inlined_call_operand.vmem [shape: f32[64,32], index: 0, kind: input, shape index: {}]
  %s1 = inlined_call_operand.vmem [shape: bf16[32,256], index: 1, kind: input, shape index: {}]
  %s2 = inlined_call_operand.vmem [shape: f32[1,256], index: 2, kind: input, shape index: {}]
  %s3 = inlined_call_operand.hbm [shape: bf16[256,256], index: 3, kind: input, shape index: {}]
  %s4 = inlined_call_operand.vmem [shape: f32[1,256], index: 4, kind: input, shape index: {}]
  %s5 = inlined_call_operand.vmem [shape: bf16[256,128], index: 5, kind: input, shape index: {}]
  %s6 = inlined_call_operand.vmem [shape: f32[1,128], index: 6, kind: input, shape index: {}]
  %s7 = inlined_call_operand.vmem [shape: f32[64,8], index: 7, kind: input, shape index: {}]
  %s8 = inlined_call_operand.vmem [shape: f32[64,8], index: 8, kind: output, shape index: {}]
  %s9 = sld [smem:[#allocation0]]
  $region69: #{tpu_custom_call.1} parent=0
    _
  %s11 = ssub.s32 1, %s9
  %s12 = scalar_select 0, %s11, %s9
  $region1: #{tpu_custom_call.1} parent=0
    #allocation2 [shape = 'u8[131072]{0}', space=vmem, size = 0x20000, scoped, tag = 'input window, operand 3, single buffered']
    #allocation3 [shape = 's32[2]{0}', space=sflag, size = 0x8, scoped, tag = 'scoped memory for tpu_custom_call.1']
    %13 = vsyncpa [#allocation3], 0
    loop: start=0, step=1, limit=4
    $region2: #{tpu_custom_call.1} parent=1 // loop_pre_header
      _
    $region3: #{tpu_custom_call.1} parent=1 // loop_header
      %s15 = sphi 0, %s19
      %p16 = scmp.ge.s32.totalorder %s15, 4
      %s25 = sphi 0, %s27
      %s28 = sphi 0, %s25
      %s29 = sphi 0, %s28
      %s45 = sphi 0, %s29
      %s49 = sphi 0, %s49
      %s51 = sphi 0, %s49
      %s52 = sphi 0, %s51
      %s66 = sphi 0, %s52
      %s70 = sphi 0, %s70
      %s72 = sphi 0, %s70
      %s73 = sphi 0, %s72
      %s87 = sphi 0, %s73
      %s91 = sphi 0, %s91
      %s93 = sphi 0, %s91
      %s94 = sphi 0, %s93
      %s108 = sphi 0, %s94
      %s112 = sphi 0, %s112
      %s114 = sphi 0, %s112
      %s115 = sphi 0, %s114
      %s129 = sphi 0, %s115
      %s133 = sphi 0, %s133
      %s135 = sphi 0, %s133
      %s136 = sphi 0, %s135
      %s150 = sphi 0, %s136
      %s154 = sphi 0, %s154
      %s156 = sphi 0, %s154
      %s157 = sphi 0, %s156
      %s171 = sphi 0, %s157
      %s177 = sphi 0, %s179
      %s180 = sphi 0, %s177
      %s181 = sphi 0, %s180
      %s197 = sphi 0, %s181
      %s203 = sphi 0, %s205
      %s206 = sphi 0, %s203
      %s207 = sphi 0, %s206
      %s223 = sphi 0, %s207
    $region4: #{tpu_custom_call.1} parent=1 // loop_header_branch
      %18 = sbr.rel (%p16) target = $region8
    $region5: #{tpu_custom_call.1} parent=1 // loop_body
      %s20 = ssub.s32 %s15, 1
      %s21 = ssub.s32 %s15, 2
      %s22 = sadd.s32 %s15, 1
      %s23 = ssub.s32 %s15, %s22
      %p24 = scmp.eq.s32.totalorder %s23, 0
      %s26 = sadd.s32 %s25, 1
      %s27 = scalar_select %p24, %s25, %s26
      %p30 = pneg %p24
      %p31 = scmp.eq.s32.totalorder %s15, 1
      %p32 = por %p30, %p31
      %p33 = scmp.ne.s32.totalorder %s25, %s28
      %p34 = scmp.eq.s32.totalorder %s15, 0
      %p35 = por %p33, %p34
      %p36 = scmp.ne.s32.totalorder %s25, %s28
      %p37 = scmp.eq.s32.totalorder %s20, 1
      %p38 = por %p36, %p37
      %p39 = scmp.ne.s32.totalorder %s28, %s29
      %p40 = scmp.eq.s32.totalorder %s20, 0
      %p41 = por %p39, %p40
      %p42 = scmp.ne.s32.totalorder %s28, %s29
      %p43 = scmp.eq.s32.totalorder %s21, 1
      %p44 = por %p42, %p43
      %p46 = scmp.ne.s32.totalorder %s29, %s45
      %p47 = scmp.eq.s32.totalorder %s21, 0
      %p48 = por %p46, %p47
      %s50 = sadd.s32 %s49, 1
      %p53 = scmp.eq.s32.totalorder %s15, 1
      %p54 = scmp.ne.s32.totalorder %s49, %s51
      %p55 = scmp.eq.s32.totalorder %s15, 0
      %p56 = por %p54, %p55
      %p57 = scmp.ne.s32.totalorder %s49, %s51
      %p58 = scmp.eq.s32.totalorder %s20, 1
      %p59 = por %p57, %p58
      %p60 = scmp.ne.s32.totalorder %s51, %s52
      %p61 = scmp.eq.s32.totalorder %s20, 0
      %p62 = por %p60, %p61
      %p63 = scmp.ne.s32.totalorder %s51, %s52
      %p64 = scmp.eq.s32.totalorder %s21, 1
      %p65 = por %p63, %p64
      %p67 = scmp.ne.s32.totalorder %s52, %s66
      %p68 = scmp.eq.s32.totalorder %s21, 0
      %p69 = por %p67, %p68
      %s71 = sadd.s32 %s70, 1
      %p74 = scmp.eq.s32.totalorder %s15, 1
      %p75 = scmp.ne.s32.totalorder %s70, %s72
      %p76 = scmp.eq.s32.totalorder %s15, 0
      %p77 = por %p75, %p76
      %p78 = scmp.ne.s32.totalorder %s70, %s72
      %p79 = scmp.eq.s32.totalorder %s20, 1
      %p80 = por %p78, %p79
      %p81 = scmp.ne.s32.totalorder %s72, %s73
      %p82 = scmp.eq.s32.totalorder %s20, 0
      %p83 = por %p81, %p82
      %p84 = scmp.ne.s32.totalorder %s72, %s73
      %p85 = scmp.eq.s32.totalorder %s21, 1
      %p86 = por %p84, %p85
      %p88 = scmp.ne.s32.totalorder %s73, %s87
      %p89 = scmp.eq.s32.totalorder %s21, 0
      %p90 = por %p88, %p89
      %s92 = sadd.s32 %s91, 1
      %p95 = scmp.eq.s32.totalorder %s15, 1
      %p96 = scmp.ne.s32.totalorder %s91, %s93
      %p97 = scmp.eq.s32.totalorder %s15, 0
      %p98 = por %p96, %p97
      %p99 = scmp.ne.s32.totalorder %s91, %s93
      %p100 = scmp.eq.s32.totalorder %s20, 1
      %p101 = por %p99, %p100
      %p102 = scmp.ne.s32.totalorder %s93, %s94
      %p103 = scmp.eq.s32.totalorder %s20, 0
      %p104 = por %p102, %p103
      %p105 = scmp.ne.s32.totalorder %s93, %s94
      %p106 = scmp.eq.s32.totalorder %s21, 1
      %p107 = por %p105, %p106
      %p109 = scmp.ne.s32.totalorder %s94, %s108
      %p110 = scmp.eq.s32.totalorder %s21, 0
      %p111 = por %p109, %p110
      %s113 = sadd.s32 %s112, 1
      %p116 = scmp.eq.s32.totalorder %s15, 1
      %p117 = scmp.ne.s32.totalorder %s112, %s114
      %p118 = scmp.eq.s32.totalorder %s15, 0
      %p119 = por %p117, %p118
      %p120 = scmp.ne.s32.totalorder %s112, %s114
      %p121 = scmp.eq.s32.totalorder %s20, 1
      %p122 = por %p120, %p121
      %p123 = scmp.ne.s32.totalorder %s114, %s115
      %p124 = scmp.eq.s32.totalorder %s20, 0
      %p125 = por %p123, %p124
      %p126 = scmp.ne.s32.totalorder %s114, %s115
      %p127 = scmp.eq.s32.totalorder %s21, 1
      %p128 = por %p126, %p127
      %p130 = scmp.ne.s32.totalorder %s115, %s129
      %p131 = scmp.eq.s32.totalorder %s21, 0
      %p132 = por %p130, %p131
      %s134 = sadd.s32 %s133, 1
      %p137 = scmp.eq.s32.totalorder %s15, 1
      %p138 = scmp.ne.s32.totalorder %s133, %s135
      %p139 = scmp.eq.s32.totalorder %s15, 0
      %p140 = por %p138, %p139
      %p141 = scmp.ne.s32.totalorder %s133, %s135
      %p142 = scmp.eq.s32.totalorder %s20, 1
      %p143 = por %p141, %p142
      %p144 = scmp.ne.s32.totalorder %s135, %s136
      %p145 = scmp.eq.s32.totalorder %s20, 0
      %p146 = por %p144, %p145
      %p147 = scmp.ne.s32.totalorder %s135, %s136
      %p148 = scmp.eq.s32.totalorder %s21, 1
      %p149 = por %p147, %p148
      %p151 = scmp.ne.s32.totalorder %s136, %s150
      %p152 = scmp.eq.s32.totalorder %s21, 0
      %p153 = por %p151, %p152
      %s155 = sadd.s32 %s154, 1
      %p158 = scmp.eq.s32.totalorder %s15, 1
      %p159 = scmp.ne.s32.totalorder %s154, %s156
      %p160 = scmp.eq.s32.totalorder %s15, 0
      %p161 = por %p159, %p160
      %p162 = scmp.ne.s32.totalorder %s154, %s156
      %p163 = scmp.eq.s32.totalorder %s20, 1
      %p164 = por %p162, %p163
      %p165 = scmp.ne.s32.totalorder %s156, %s157
      %p166 = scmp.eq.s32.totalorder %s20, 0
      %p167 = por %p165, %p166
      %p168 = scmp.ne.s32.totalorder %s156, %s157
      %p169 = scmp.eq.s32.totalorder %s21, 1
      %p170 = por %p168, %p169
      %p172 = scmp.ne.s32.totalorder %s157, %s171
      %p173 = scmp.eq.s32.totalorder %s21, 0
      %p174 = por %p172, %p173
      %s175 = ssub.s32 %s15, %s22
      %p176 = scmp.eq.s32.totalorder %s175, 0
      %s178 = sadd.s32 %s177, 1
      %s179 = scalar_select %p176, %s177, %s178
      %p182 = pneg %p176
      %p183 = scmp.eq.s32.totalorder %s15, 1
      %p184 = por %p182, %p183
      %p185 = scmp.ne.s32.totalorder %s177, %s180
      %p186 = scmp.eq.s32.totalorder %s15, 0
      %p187 = por %p185, %p186
      %p188 = scmp.ne.s32.totalorder %s177, %s180
      %p189 = scmp.eq.s32.totalorder %s20, 1
      %p190 = por %p188, %p189
      %p191 = scmp.ne.s32.totalorder %s180, %s181
      %p192 = scmp.eq.s32.totalorder %s20, 0
      %p193 = por %p191, %p192
      %p194 = scmp.ne.s32.totalorder %s180, %s181
      %p195 = scmp.eq.s32.totalorder %s21, 1
      %p196 = por %p194, %p195
      %p198 = scmp.ne.s32.totalorder %s181, %s197
      %p199 = scmp.eq.s32.totalorder %s21, 0
      %p200 = por %p198, %p199
      %s201 = ssub.s32 %s15, %s22
      %p202 = scmp.eq.s32.totalorder %s201, 0
      %s204 = sadd.s32 %s203, 1
      %s205 = scalar_select %p202, %s203, %s204
      %p208 = pneg %p202
      %p209 = scmp.eq.s32.totalorder %s15, 1
      %p210 = por %p208, %p209
      %p211 = scmp.ne.s32.totalorder %s203, %s206
      %p212 = scmp.eq.s32.totalorder %s15, 0
      %p213 = por %p211, %p212
      %p214 = scmp.ne.s32.totalorder %s203, %s206
      %p215 = scmp.eq.s32.totalorder %s20, 1
      %p216 = por %p214, %p215
      %p217 = scmp.ne.s32.totalorder %s206, %s207
      %p218 = scmp.eq.s32.totalorder %s20, 0
      %p219 = por %p217, %p218
      %p220 = scmp.ne.s32.totalorder %s206, %s207
      %p221 = scmp.eq.s32.totalorder %s21, 1
      %p222 = por %p220, %p221
      %p224 = scmp.ne.s32.totalorder %s207, %s223
      %p225 = scmp.eq.s32.totalorder %s21, 0
      %p226 = por %p224, %p225
      %p227 = scmp.le.s32.totalorder 1, %s15
      %p228 = scmp.lt.s32.totalorder %s15, 3
      %p229 = pnand %p227, %p228
      %p230 = pneg %p229
      // Predicated region
      $region9: #{tpu_custom_call.1} parent=5 // pred_check
        _
      $region10: #{tpu_custom_call.1} parent=5 // pred_check_branch
        %232 = sbr.rel (%p229) target = $region12
      $region11: #{tpu_custom_call.1} parent=5 // pred_region
        %s233 = ssub.s32 %s15, 1
        // Predicated region
        $region13: #{tpu_custom_call.1} parent=11 // pred_check
          %p234 = pneg %p62
        $region14: #{tpu_custom_call.1} parent=11 // pred_check_branch
          %236 = sbr.rel (%p234) target = $region16
        $region15: #{tpu_custom_call.1} parent=11 // pred_region
          _
        $region16: #{tpu_custom_call.1} parent=11 // pred_fallthru
          _
        // Predicated region
        $region17: #{tpu_custom_call.1} parent=11 // pred_check
          %p237 = pneg %p83
        $region18: #{tpu_custom_call.1} parent=11 // pred_check_branch
          %239 = sbr.rel (%p237) target = $region20
        $region19: #{tpu_custom_call.1} parent=11 // pred_region
          _
        $region20: #{tpu_custom_call.1} parent=11 // pred_fallthru
          _
        // Predicated region
        $region21: #{tpu_custom_call.1} parent=11 // pred_check
          %p240 = pneg %p104
        $region22: #{tpu_custom_call.1} parent=11 // pred_check_branch
          %242 = sbr.rel (%p240) target = $region24
        $region23: #{tpu_custom_call.1} parent=11 // pred_region
          %s244 = ssub.s32 4096, 4096
          %245 = vsyncadd [#allocation3], %s244
          %s246 = sshll.u32 [#allocation2], 4
          %s247 = int_to_ptr.vmem [resolvable:$true] %s246
          %252 = dma.hbm_to_vmem [thread:$0]  %s3, 4096, %s247, [#allocation3], 128, 128, 8
        $region24: #{tpu_custom_call.1} parent=11 // pred_fallthru
          _
        // Predicated region
        $region25: #{tpu_custom_call.1} parent=11 // pred_check
          %p253 = pneg %p125
        $region26: #{tpu_custom_call.1} parent=11 // pred_check_branch
          %255 = sbr.rel (%p253) target = $region28
        $region27: #{tpu_custom_call.1} parent=11 // pred_region
          _
        $region28: #{tpu_custom_call.1} parent=11 // pred_fallthru
          _
        // Predicated region
        $region29: #{tpu_custom_call.1} parent=11 // pred_check
          %p256 = pneg %p146
        $region30: #{tpu_custom_call.1} parent=11 // pred_check_branch
          %258 = sbr.rel (%p256) target = $region32
        $region31: #{tpu_custom_call.1} parent=11 // pred_region
          _
        $region32: #{tpu_custom_call.1} parent=11 // pred_fallthru
          _
        // Predicated region
        $region33: #{tpu_custom_call.1} parent=11 // pred_check
          %p259 = pneg %p167
        $region34: #{tpu_custom_call.1} parent=11 // pred_check_branch
          %261 = sbr.rel (%p259) target = $region36
        $region35: #{tpu_custom_call.1} parent=11 // pred_region
          _
        $region36: #{tpu_custom_call.1} parent=11 // pred_fallthru
          _
      $region12: #{tpu_custom_call.1} parent=5 // pred_fallthru
        _
      %p262 = scmp.lt.s32.totalorder %s15, 2
      // Predicated region
      $region37: #{tpu_custom_call.1} parent=5 // pred_check
        %p263 = pneg %p262
      $region38: #{tpu_custom_call.1} parent=5 // pred_check_branch
        %265 = sbr.rel (%p263) target = $region40
      $region39: #{tpu_custom_call.1} parent=5 // pred_region
        // Predicated region
        $region41: #{tpu_custom_call.1} parent=39 // pred_check
          %p266 = pneg %p35
        $region42: #{tpu_custom_call.1} parent=39 // pred_check_branch
          %268 = sbr.rel (%p266) target = $region44
        $region43: #{tpu_custom_call.1} parent=39 // pred_region
          %s269 = smul.u32 4, %s15
          %p270 = scmp.lt.s32.totalorder %s269, 7
          %s271 = scalar_select %p270, %s269, 7
          %s272 = smul.addr %s271, 8
          %s273 = scalar_lea.vmem %s0, %s272
          %s274 = smul.u32 4, %s15
        $region44: #{tpu_custom_call.1} parent=39 // pred_fallthru
          _
        // Predicated region
        $region45: #{tpu_custom_call.1} parent=39 // pred_check
          %p275 = pneg %p187
        $region46: #{tpu_custom_call.1} parent=39 // pred_check_branch
          %277 = sbr.rel (%p275) target = $region48
        $region47: #{tpu_custom_call.1} parent=39 // pred_region
          %s278 = smul.u32 4, %s15
          %p279 = scmp.lt.s32.totalorder %s278, 7
          %s280 = scalar_select %p279, %s278, 7
          %s281 = smul.addr %s280, 8
          %s282 = scalar_lea.vmem %s7, %s281
          %s283 = smul.u32 4, %s15
        $region48: #{tpu_custom_call.1} parent=39 // pred_fallthru
          _
      $region40: #{tpu_custom_call.1} parent=5 // pred_fallthru
        _
      %p284 = scmp.le.s32.totalorder 1, %s15
      %p285 = scmp.lt.s32.totalorder %s15, 3
      %p286 = pnand %p284, %p285
      %p287 = pneg %p286
      // Predicated region
      $region49: #{tpu_custom_call.1} parent=5 // pred_check
        _
      $region50: #{tpu_custom_call.1} parent=5 // pred_check_branch
        %289 = sbr.rel (%p286) target = $region52
      $region51: #{tpu_custom_call.1} parent=5 // pred_region
        %s290 = ssub.s32 %s15, 1
        // Predicated region
        $region53: #{tpu_custom_call.1} parent=51 // pred_check
          %p291 = pneg %p104
        $region54: #{tpu_custom_call.1} parent=51 // pred_check_branch
          %293 = sbr.rel (%p291) target = $region56
        $region55: #{tpu_custom_call.1} parent=51 // pred_region
          %294 = dma.done [#allocation3], 4096
        $region56: #{tpu_custom_call.1} parent=51 // pred_fallthru
          _
        %s295 = smul.u32 4, %s20
        %p296 = scmp.lt.s32.totalorder %s295, 7
        %s297 = scalar_select %p296, %s295, 7
        %s298 = smul.addr %s297, 8
        %s299 = scalar_lea.vmem %s0, %s298
        %p300 = pneg %p41
        %p301 = pneg %p38
        %p302 = pneg %p62
        %p303 = pneg %p59
        %p304 = pneg %p83
        %p305 = pneg %p80
        %p306 = pneg %p104
        %p307 = pneg %p101
        %p308 = pneg %p125
        %p309 = pneg %p122
        %p310 = pneg %p146
        %p311 = pneg %p143
        %p312 = pneg %p167
        %p313 = pneg %p164
        %s314 = smul.u32 4, %s20
        %p315 = scmp.lt.s32.totalorder %s314, 7
        %s316 = scalar_select %p315, %s314, 7
        %s317 = smul.addr %s316, 8
        %s318 = scalar_lea.vmem %s7, %s317
        %p319 = pneg %p193
        %p320 = pneg %p190
        %p321 = pneg %p219
        %p322 = pneg %p216
        %s323 = smul.u32 4, %s20
        %p324 = scmp.lt.s32.totalorder %s323, 7
        %s325 = scalar_select %p324, %s323, 7
        %s326 = smul.addr %s325, 8
        %s327 = scalar_lea.vmem %s8, %s326
        %s328 = smul.u32 4, %s20
        %p329 = scmp.lt.s32.totalorder %s328, 7
        %s330 = scalar_select %p329, %s328, 7
        %s331 = smul.addr %s330, 8
        %s332 = scalar_lea.vmem %s0, %s331
        %s333 = smul.u32 4, %s20
        %s334 = smul.u32 4, %s20
        %p335 = scmp.lt.s32.totalorder %s334, 7
        %s336 = scalar_select %p335, %s334, 7
        %s337 = smul.addr %s336, 8
        %s338 = scalar_lea.vmem %s7, %s337
        %s339 = smul.u32 4, %s20
        %s340 = smul.u32 4, %s20
        %p341 = scmp.lt.s32.totalorder %s340, 7
        %s342 = scalar_select %p341, %s340, 7
        %s343 = smul.addr %s342, 8
        %s344 = scalar_lea.vmem %s8, %s343
        %s345 = smul.u32 4, %s20
        %v347 = vld [vmem:[%s332] sm:$0xff]
        %v348 = vld [vmem:[%s332 + $0x8] sm:$0xff]
        %v349 = vld [vmem:[%s332 + $0x10] sm:$0xff]
        %v350 = vld [vmem:[%s332 + $0x18] sm:$0xff]
        %v351 = vpack.c.bf16 %v348, %v347
        %v352 = vpack.c.bf16 %v350, %v349
        %v353 = vld [vmem:[%s1] sm:$0xff]
        %v354 = vld [vmem:[%s1 + $0x8] sm:$0xff]
        %v355 = vld [vmem:[%s1 + $0x10] sm:$0xff]
        %v356 = vld [vmem:[%s1 + $0x18] sm:$0xff]
        %v357 = vld [vmem:[%s2] sm:$0x3]
        %v359 = vlaneseq
        %v360 = vshrl.u32 %v359, 7
        %v361 = vsub.s32 0, %v360
        %v362 = vrot.slane %v357, %v361
        %v363 = vlaneseq
        %v364 = vshrl.u32 %v363, 7
        %v365 = vsub.s32 1, %v364
        %v366 = vrot.slane %v357, %v365
        %v373 = vunpack.c.l.b16 %v353
        %v374 = vunpack.c.h.b16 %v353
        %v375 = vunpack.c.l.b16 %v354
        %v376 = vunpack.c.h.b16 %v354
        %v377 = vunpack.c.l.b16 %v355
        %v378 = vunpack.c.h.b16 %v355
        %v379 = vunpack.c.l.b16 %v356
        %v380 = vunpack.c.h.b16 %v356
        %v381 = vpack.c.b16 %v375, %v373
        %v382 = vpack.c.b16 %v376, %v374
        %v383 = vpack.c.b16 %v379, %v377
        %v384 = vpack.c.b16 %v380, %v378
        %vm389 = vcmask 261120
        %v391 = vsel %vm389, %v351, 0
        %v394 = vsel %vm389, %v352, 0
        %396 = vmatprep.subr.bf16.mxu0 %v382
        %397 = vmatpush1.bf16.msra.mxu0 %v381
        %398 = vmatprep.subr.bf16.mxu0 %v384
        %399 = vmatpush1.bf16.msra.mxu0 %v383
        %400 = vmatprep.subr.bf16.mxu0 0
        %401 = vmatpush1.bf16.msra.mxu0 0
        %402 = vmatprep.subr.bf16.mxu0 0
        %403 = vmatpush1.bf16.msra.mxu0 0
        %404 = vmatprep.subr.bf16.mxu0 0
        %405 = vmatpush1.bf16.msra.mxu0 0
        %406 = vmatprep.subr.bf16.mxu0 0
        %407 = vmatpush1.bf16.msra.mxu0 0
        %408 = vmatprep.subr.bf16.mxu0 0
        %409 = vmatpush1.bf16.msra.mxu0 0
        %410 = vmatprep.subr.bf16.mxu0 0
        %411 = vmatpush1.bf16.msra.mxu0 0
        %412 = vmatprep.subr.bf16.mxu0 0
        %413 = vmatpush1.bf16.msra.mxu0 0
        %414 = vmatprep.subr.bf16.mxu0 0
        %415 = vmatpush1.bf16.msra.mxu0 0
        %416 = vmatprep.subr.bf16.mxu0 0
        %417 = vmatpush1.bf16.msra.mxu0 0
        %418 = vmatprep.subr.bf16.mxu0 0
        %419 = vmatpush1.bf16.msra.mxu0 0
        %420 = vmatprep.subr.bf16.mxu0 0
        %421 = vmatpush1.bf16.msra.mxu0 0
        %422 = vmatprep.subr.bf16.mxu0 0
        %423 = vmatpush1.bf16.msra.mxu0 0
        %424 = vmatprep.subr.bf16.mxu0 0
        %425 = vmatpush1.bf16.msra.mxu0 0
        %426 = vmatprep.subr.bf16.mxu0 0
        %427 = vmatpush1.bf16.msra.mxu0 0
        %428 = vmatprep.mubr.bf16.mxu0 0
        %429 = vmatmul.mubr.bf16.gmra.mrb[0].mxu0 %v391
        %v430 = vpop.f32.mrb[0].mxu0
        %v431 = vadd.f32 %v362, %v430
        %v432 = vpop.f32.mrb[0].mxu0
        %v433 = vadd.f32 %v366, %v432
        %v434 = vpop.f32.mrb[0].mxu0
        %v435 = vadd.f32 %v362, %v434
        %v436 = vpop.f32.mrb[0].mxu0
        %v437 = vadd.f32 %v366, %v436
        %438 = vmatprep.mubr.bf16.mxu0 0
        %439 = vmatmul.mubr.bf16.gmra.mrb[0].mxu0 %v394
        %v440 = vpop.f32.mrb[0].mxu0
        %v441 = vadd.f32 %v362, %v440
        %v442 = vpop.f32.mrb[0].mxu0
        %v443 = vadd.f32 %v366, %v442
        %v444 = vpop.f32.mrb[0].mxu0
        %v445 = vadd.f32 %v362, %v444
        %v446 = vpop.f32.mrb[0].mxu0
        %v447 = vadd.f32 %v366, %v446
        %448 = vdwg.mxu0
        %v449 = vmax.f32 %v431, 0.0
        %v450 = vmax.f32 %v433, 0.0
        %v451 = vmax.f32 %v435, 0.0
        %v452 = vmax.f32 %v437, 0.0
        %v453 = vmax.f32 %v441, 0.0
        %v454 = vmax.f32 %v443, 0.0
        %v455 = vmax.f32 %v445, 0.0
        %v456 = vmax.f32 %v447, 0.0
        %v457 = vpack.c.bf16 %v451, %v449
        %v458 = vpack.c.bf16 %v452, %v450
        %v459 = vpack.c.bf16 %v455, %v453
        %v460 = vpack.c.bf16 %v456, %v454
        %v461 = vld [vmem:[#allocation2] sm:$0xff]
        %v462 = vld [vmem:[#allocation2 + $0x8] sm:$0xff]
        %v463 = vld [vmem:[#allocation2 + $0x10] sm:$0xff]
        %v464 = vld [vmem:[#allocation2 + $0x18] sm:$0xff]
        %v465 = vld [vmem:[#allocation2 + $0x20] sm:$0xff]
        %v466 = vld [vmem:[#allocation2 + $0x28] sm:$0xff]
        %v467 = vld [vmem:[#allocation2 + $0x30] sm:$0xff]
        %v468 = vld [vmem:[#allocation2 + $0x38] sm:$0xff]
        %v469 = vld [vmem:[#allocation2 + $0x40] sm:$0xff]
        %v470 = vld [vmem:[#allocation2 + $0x48] sm:$0xff]
        %v471 = vld [vmem:[#allocation2 + $0x50] sm:$0xff]
        %v472 = vld [vmem:[#allocation2 + $0x58] sm:$0xff]
        %v473 = vld [vmem:[#allocation2 + $0x60] sm:$0xff]
        %v474 = vld [vmem:[#allocation2 + $0x68] sm:$0xff]
        %v475 = vld [vmem:[#allocation2 + $0x70] sm:$0xff]
        %v476 = vld [vmem:[#allocation2 + $0x78] sm:$0xff]
        %v477 = vld [vmem:[#allocation2 + $0x80] sm:$0xff]
        %v478 = vld [vmem:[#allocation2 + $0x88] sm:$0xff]
        %v479 = vld [vmem:[#allocation2 + $0x90] sm:$0xff]
        %v480 = vld [vmem:[#allocation2 + $0x98] sm:$0xff]
        %v481 = vld [vmem:[#allocation2 + $0xa0] sm:$0xff]
        %v482 = vld [vmem:[#allocation2 + $0xa8] sm:$0xff]
        %v483 = vld [vmem:[#allocation2 + $0xb0] sm:$0xff]
        %v484 = vld [vmem:[#allocation2 + $0xb8] sm:$0xff]
        %v485 = vld [vmem:[#allocation2 + $0xc0] sm:$0xff]
        %v486 = vld [vmem:[#allocation2 + $0xc8] sm:$0xff]
        %v487 = vld [vmem:[#allocation2 + $0xd0] sm:$0xff]
        %v488 = vld [vmem:[#allocation2 + $0xd8] sm:$0xff]
        %v489 = vld [vmem:[#allocation2 + $0xe0] sm:$0xff]
        %v490 = vld [vmem:[#allocation2 + $0xe8] sm:$0xff]
        %v491 = vld [vmem:[#allocation2 + $0xf0] sm:$0xff]
        %v492 = vld [vmem:[#allocation2 + $0xf8] sm:$0xff]
        %v493 = vld [vmem:[%s4] sm:$0x3]
        %v495 = vlaneseq
        %v496 = vshrl.u32 %v495, 7
        %v497 = vsub.s32 0, %v496
        %v498 = vrot.slane %v493, %v497
        %v499 = vlaneseq
        %v500 = vshrl.u32 %v499, 7
        %v501 = vsub.s32 1, %v500
        %v502 = vrot.slane %v493, %v501
        %v537 = vunpack.c.l.b16 %v461
        %v538 = vunpack.c.h.b16 %v461
        %v539 = vunpack.c.l.b16 %v462
        %v540 = vunpack.c.h.b16 %v462
        %v541 = vunpack.c.l.b16 %v463
        %v542 = vunpack.c.h.b16 %v463
        %v543 = vunpack.c.l.b16 %v464
        %v544 = vunpack.c.h.b16 %v464
        %v545 = vunpack.c.l.b16 %v465
        %v546 = vunpack.c.h.b16 %v465
        %v547 = vunpack.c.l.b16 %v466
        %v548 = vunpack.c.h.b16 %v466
        %v549 = vunpack.c.l.b16 %v467
        %v550 = vunpack.c.h.b16 %v467
        %v551 = vunpack.c.l.b16 %v468
        %v552 = vunpack.c.h.b16 %v468
        %v553 = vunpack.c.l.b16 %v469
        %v554 = vunpack.c.h.b16 %v469
        %v555 = vunpack.c.l.b16 %v470
        %v556 = vunpack.c.h.b16 %v470
        %v557 = vunpack.c.l.b16 %v471
        %v558 = vunpack.c.h.b16 %v471
        %v559 = vunpack.c.l.b16 %v472
        %v560 = vunpack.c.h.b16 %v472
        %v561 = vunpack.c.l.b16 %v473
        %v562 = vunpack.c.h.b16 %v473
        %v563 = vunpack.c.l.b16 %v474
        %v564 = vunpack.c.h.b16 %v474
        %v565 = vunpack.c.l.b16 %v475
        %v566 = vunpack.c.h.b16 %v475
        %v567 = vunpack.c.l.b16 %v476
        %v568 = vunpack.c.h.b16 %v476
        %v569 = vunpack.c.l.b16 %v477
        %v570 = vunpack.c.h.b16 %v477
        %v571 = vunpack.c.l.b16 %v478
        %v572 = vunpack.c.h.b16 %v478
        %v573 = vunpack.c.l.b16 %v479
        %v574 = vunpack.c.h.b16 %v479
        %v575 = vunpack.c.l.b16 %v480
        %v576 = vunpack.c.h.b16 %v480
        %v577 = vunpack.c.l.b16 %v481
        %v578 = vunpack.c.h.b16 %v481
        %v579 = vunpack.c.l.b16 %v482
        %v580 = vunpack.c.h.b16 %v482
        %v581 = vunpack.c.l.b16 %v483
        %v582 = vunpack.c.h.b16 %v483
        %v583 = vunpack.c.l.b16 %v484
        %v584 = vunpack.c.h.b16 %v484
        %v585 = vunpack.c.l.b16 %v485
        %v586 = vunpack.c.h.b16 %v485
        %v587 = vunpack.c.l.b16 %v486
        %v588 = vunpack.c.h.b16 %v486
        %v589 = vunpack.c.l.b16 %v487
        %v590 = vunpack.c.h.b16 %v487
        %v591 = vunpack.c.l.b16 %v488
        %v592 = vunpack.c.h.b16 %v488
        %v593 = vunpack.c.l.b16 %v489
        %v594 = vunpack.c.h.b16 %v489
        %v595 = vunpack.c.l.b16 %v490
        %v596 = vunpack.c.h.b16 %v490
        %v597 = vunpack.c.l.b16 %v491
        %v598 = vunpack.c.h.b16 %v491
        %v599 = vunpack.c.l.b16 %v492
        %v600 = vunpack.c.h.b16 %v492
        %v601 = vpack.c.b16 %v539, %v537
        %v602 = vpack.c.b16 %v540, %v538
        %v603 = vpack.c.b16 %v543, %v541
        %v604 = vpack.c.b16 %v544, %v542
        %v605 = vpack.c.b16 %v547, %v545
        %v606 = vpack.c.b16 %v548, %v546
        %v607 = vpack.c.b16 %v551, %v549
        %v608 = vpack.c.b16 %v552, %v550
        %v609 = vpack.c.b16 %v555, %v553
        %v610 = vpack.c.b16 %v556, %v554
        %v611 = vpack.c.b16 %v559, %v557
        %v612 = vpack.c.b16 %v560, %v558
        %v613 = vpack.c.b16 %v563, %v561
        %v614 = vpack.c.b16 %v564, %v562
        %v615 = vpack.c.b16 %v567, %v565
        %v616 = vpack.c.b16 %v568, %v566
        %v617 = vpack.c.b16 %v571, %v569
        %v618 = vpack.c.b16 %v572, %v570
        %v619 = vpack.c.b16 %v575, %v573
        %v620 = vpack.c.b16 %v576, %v574
        %v621 = vpack.c.b16 %v579, %v577
        %v622 = vpack.c.b16 %v580, %v578
        %v623 = vpack.c.b16 %v583, %v581
        %v624 = vpack.c.b16 %v584, %v582
        %v625 = vpack.c.b16 %v587, %v585
        %v626 = vpack.c.b16 %v588, %v586
        %v627 = vpack.c.b16 %v591, %v589
        %v628 = vpack.c.b16 %v592, %v590
        %v629 = vpack.c.b16 %v595, %v593
        %v630 = vpack.c.b16 %v596, %v594
        %v631 = vpack.c.b16 %v599, %v597
        %v632 = vpack.c.b16 %v600, %v598
        %665 = vmatprep.subr.bf16.mxu0 %v602
        %666 = vmatpush1.bf16.msra.mxu0 %v601
        %667 = vmatprep.subr.bf16.mxu0 %v604
        %668 = vmatpush1.bf16.msra.mxu0 %v603
        %669 = vmatprep.subr.bf16.mxu0 %v606
        %670 = vmatpush1.bf16.msra.mxu0 %v605
        %671 = vmatprep.subr.bf16.mxu0 %v608
        %672 = vmatpush1.bf16.msra.mxu0 %v607
        %673 = vmatprep.subr.bf16.mxu0 %v610
        %674 = vmatpush1.bf16.msra.mxu0 %v609
        %675 = vmatprep.subr.bf16.mxu0 %v612
        %676 = vmatpush1.bf16.msra.mxu0 %v611
        %677 = vmatprep.subr.bf16.mxu0 %v614
        %678 = vmatpush1.bf16.msra.mxu0 %v613
        %679 = vmatprep.subr.bf16.mxu0 %v616
        %680 = vmatpush1.bf16.msra.mxu0 %v615
        %681 = vmatprep.subr.bf16.mxu0 %v618
        %682 = vmatpush1.bf16.msra.mxu0 %v617
        %683 = vmatprep.subr.bf16.mxu0 %v620
        %684 = vmatpush1.bf16.msra.mxu0 %v619
        %685 = vmatprep.subr.bf16.mxu0 %v622
        %686 = vmatpush1.bf16.msra.mxu0 %v621
        %687 = vmatprep.subr.bf16.mxu0 %v624
        %688 = vmatpush1.bf16.msra.mxu0 %v623
        %689 = vmatprep.subr.bf16.mxu0 %v626
        %690 = vmatpush1.bf16.msra.mxu0 %v625
        %691 = vmatprep.subr.bf16.mxu0 %v628
        %692 = vmatpush1.bf16.msra.mxu0 %v627
        %693 = vmatprep.subr.bf16.mxu0 %v630
        %694 = vmatpush1.bf16.msra.mxu0 %v629
        %695 = vmatprep.subr.bf16.mxu0 %v632
        %696 = vmatpush1.bf16.msra.mxu0 %v631
        %697 = vmatprep.mubr.bf16.mxu0 %v458
        %698 = vmatmul.mubr.bf16.gmra.mrb[0].mxu0 %v457
        %v699 = vpop.f32.mrb[0].mxu0
        %v700 = vadd.f32 %v498, %v699
        %v701 = vpop.f32.mrb[0].mxu0
        %v702 = vadd.f32 %v502, %v701
        %v703 = vpop.f32.mrb[0].mxu0
        %v704 = vadd.f32 %v498, %v703
        %v705 = vpop.f32.mrb[0].mxu0
        %v706 = vadd.f32 %v502, %v705
        %707 = vmatprep.mubr.bf16.mxu0 %v460
        %708 = vmatmul.mubr.bf16.gmra.mrb[0].mxu0 %v459
        %v709 = vpop.f32.mrb[0].mxu0
        %v710 = vadd.f32 %v498, %v709
        %v711 = vpop.f32.mrb[0].mxu0
        %v712 = vadd.f32 %v502, %v711
        %v713 = vpop.f32.mrb[0].mxu0
        %v714 = vadd.f32 %v498, %v713
        %v715 = vpop.f32.mrb[0].mxu0
        %v716 = vadd.f32 %v502, %v715
        %717 = vdwg.mxu0
        %v718 = vmax.f32 %v700, 0.0
        %v719 = vmax.f32 %v702, 0.0
        %v720 = vmax.f32 %v704, 0.0
        %v721 = vmax.f32 %v706, 0.0
        %v722 = vmax.f32 %v710, 0.0
        %v723 = vmax.f32 %v712, 0.0
        %v724 = vmax.f32 %v714, 0.0
        %v725 = vmax.f32 %v716, 0.0
        %v726 = vpack.c.bf16 %v720, %v718
        %v727 = vpack.c.bf16 %v721, %v719
        %v728 = vpack.c.bf16 %v724, %v722
        %v729 = vpack.c.bf16 %v725, %v723
        %v730 = vld [vmem:[%s5] sm:$0xf]
        %v731 = vld [vmem:[%s5 + $0x4] sm:$0xf]
        %v732 = vld [vmem:[%s5 + $0x8] sm:$0xf]
        %v733 = vld [vmem:[%s5 + $0xc] sm:$0xf]
        %v734 = vld [vmem:[%s5 + $0x10] sm:$0xf]
        %v735 = vld [vmem:[%s5 + $0x14] sm:$0xf]
        %v736 = vld [vmem:[%s5 + $0x18] sm:$0xf]
        %v737 = vld [vmem:[%s5 + $0x1c] sm:$0xf]
        %v738 = vld [vmem:[%s5 + $0x20] sm:$0xf]
        %v739 = vld [vmem:[%s5 + $0x24] sm:$0xf]
        %v740 = vld [vmem:[%s5 + $0x28] sm:$0xf]
        %v741 = vld [vmem:[%s5 + $0x2c] sm:$0xf]
        %v742 = vld [vmem:[%s5 + $0x30] sm:$0xf]
        %v743 = vld [vmem:[%s5 + $0x34] sm:$0xf]
        %v744 = vld [vmem:[%s5 + $0x38] sm:$0xf]
        %v745 = vld [vmem:[%s5 + $0x3c] sm:$0xf]
        %v746 = vld [vmem:[%s5 + $0x40] sm:$0xf]
        %v747 = vld [vmem:[%s5 + $0x44] sm:$0xf]
        %v748 = vld [vmem:[%s5 + $0x48] sm:$0xf]
        %v749 = vld [vmem:[%s5 + $0x4c] sm:$0xf]
        %v750 = vld [vmem:[%s5 + $0x50] sm:$0xf]
        %v751 = vld [vmem:[%s5 + $0x54] sm:$0xf]
        %v752 = vld [vmem:[%s5 + $0x58] sm:$0xf]
        %v753 = vld [vmem:[%s5 + $0x5c] sm:$0xf]
        %v754 = vld [vmem:[%s5 + $0x60] sm:$0xf]
        %v755 = vld [vmem:[%s5 + $0x64] sm:$0xf]
        %v756 = vld [vmem:[%s5 + $0x68] sm:$0xf]
        %v757 = vld [vmem:[%s5 + $0x6c] sm:$0xf]
        %v758 = vld [vmem:[%s5 + $0x70] sm:$0xf]
        %v759 = vld [vmem:[%s5 + $0x74] sm:$0xf]
        %v760 = vld [vmem:[%s5 + $0x78] sm:$0xf]
        %v761 = vld [vmem:[%s5 + $0x7c] sm:$0xf]
        %v762 = vld [vmem:[%s6] sm:$0x1]
        %v764 = vlaneseq
        %v765 = vshrl.u32 %v764, 7
        %v766 = vsub.s32 0, %v765
        %v767 = vrot.slane %v762, %v766
        %v801 = vunpack.c.l.b16 %v730
        %v802 = vunpack.c.l.b16 %v731
        %v803 = vunpack.c.l.b16 %v732
        %v804 = vunpack.c.l.b16 %v733
        %v805 = vunpack.c.l.b16 %v734
        %v806 = vunpack.c.l.b16 %v735
        %v807 = vunpack.c.l.b16 %v736
        %v808 = vunpack.c.l.b16 %v737
        %v809 = vunpack.c.l.b16 %v738
        %v810 = vunpack.c.l.b16 %v739
        %v811 = vunpack.c.l.b16 %v740
        %v812 = vunpack.c.l.b16 %v741
        %v813 = vunpack.c.l.b16 %v742
        %v814 = vunpack.c.l.b16 %v743
        %v815 = vunpack.c.l.b16 %v744
        %v816 = vunpack.c.l.b16 %v745
        %v817 = vunpack.c.l.b16 %v746
        %v818 = vunpack.c.l.b16 %v747
        %v819 = vunpack.c.l.b16 %v748
        %v820 = vunpack.c.l.b16 %v749
        %v821 = vunpack.c.l.b16 %v750
        %v822 = vunpack.c.l.b16 %v751
        %v823 = vunpack.c.l.b16 %v752
        %v824 = vunpack.c.l.b16 %v753
        %v825 = vunpack.c.l.b16 %v754
        %v826 = vunpack.c.l.b16 %v755
        %v827 = vunpack.c.l.b16 %v756
        %v828 = vunpack.c.l.b16 %v757
        %v829 = vunpack.c.l.b16 %v758
        %v830 = vunpack.c.l.b16 %v759
        %v831 = vunpack.c.l.b16 %v760
        %v832 = vunpack.c.l.b16 %v761
        %v833 = vpack.c.b16 %v802, %v801
        %v834 = vpack.c.b16 %v804, %v803
        %v835 = vpack.c.b16 %v806, %v805
        %v836 = vpack.c.b16 %v808, %v807
        %v837 = vpack.c.b16 %v810, %v809
        %v838 = vpack.c.b16 %v812, %v811
        %v839 = vpack.c.b16 %v814, %v813
        %v840 = vpack.c.b16 %v816, %v815
        %v841 = vpack.c.b16 %v818, %v817
        %v842 = vpack.c.b16 %v820, %v819
        %v843 = vpack.c.b16 %v822, %v821
        %v844 = vpack.c.b16 %v824, %v823
        %v845 = vpack.c.b16 %v826, %v825
        %v846 = vpack.c.b16 %v828, %v827
        %v847 = vpack.c.b16 %v830, %v829
        %v848 = vpack.c.b16 %v832, %v831
        %865 = vmatprep.subr.bf16.mxu0 0
        %866 = vmatpush1.bf16.msra.mxu0 %v833
        %867 = vmatprep.subr.bf16.mxu0 0
        %868 = vmatpush1.bf16.msra.mxu0 %v834
        %869 = vmatprep.subr.bf16.mxu0 0
        %870 = vmatpush1.bf16.msra.mxu0 %v835
        %871 = vmatprep.subr.bf16.mxu0 0
        %872 = vmatpush1.bf16.msra.mxu0 %v836
        %873 = vmatprep.subr.bf16.mxu0 0
        %874 = vmatpush1.bf16.msra.mxu0 %v837
        %875 = vmatprep.subr.bf16.mxu0 0
        %876 = vmatpush1.bf16.msra.mxu0 %v838
        %877 = vmatprep.subr.bf16.mxu0 0
        %878 = vmatpush1.bf16.msra.mxu0 %v839
        %879 = vmatprep.subr.bf16.mxu0 0
        %880 = vmatpush1.bf16.msra.mxu0 %v840
        %881 = vmatprep.subr.bf16.mxu0 0
        %882 = vmatpush1.bf16.msra.mxu0 %v841
        %883 = vmatprep.subr.bf16.mxu0 0
        %884 = vmatpush1.bf16.msra.mxu0 %v842
        %885 = vmatprep.subr.bf16.mxu0 0
        %886 = vmatpush1.bf16.msra.mxu0 %v843
        %887 = vmatprep.subr.bf16.mxu0 0
        %888 = vmatpush1.bf16.msra.mxu0 %v844
        %889 = vmatprep.subr.bf16.mxu0 0
        %890 = vmatpush1.bf16.msra.mxu0 %v845
        %891 = vmatprep.subr.bf16.mxu0 0
        %892 = vmatpush1.bf16.msra.mxu0 %v846
        %893 = vmatprep.subr.bf16.mxu0 0
        %894 = vmatpush1.bf16.msra.mxu0 %v847
        %895 = vmatprep.subr.bf16.mxu0 0
        %896 = vmatpush1.bf16.msra.mxu0 %v848
        %897 = vmatprep.mubr.bf16.mxu0 %v727
        %898 = vmatmul.mubr.bf16.gmra.mrb[0].mxu0 %v726
        %v899 = vpop.f32.mrb[0].mxu0
        %v900 = vadd.f32 %v767, %v899
        %v901 = vpop.f32.mrb[0].mxu0
        %v902 = vpop.f32.mrb[0].mxu0
        %v903 = vadd.f32 %v767, %v902
        %v904 = vpop.f32.mrb[0].mxu0
        %905 = vmatprep.mubr.bf16.mxu0 %v729
        %906 = vmatmul.mubr.bf16.gmra.mrb[0].mxu0 %v728
        %v907 = vpop.f32.mrb[0].mxu0
        %v908 = vadd.f32 %v767, %v907
        %v909 = vpop.f32.mrb[0].mxu0
        %v910 = vpop.f32.mrb[0].mxu0
        %v911 = vadd.f32 %v767, %v910
        %v912 = vpop.f32.mrb[0].mxu0
        %913 = vdwg.mxu0
        %914 = vrot.lane.b32.xlu0 %v900, 64
        %v915 = vpop.permute.xlu0 %914
        %916 = vrot.lane.b32.xlu0 %v903, 64
        %v917 = vpop.permute.xlu0 %916
        %918 = vrot.lane.b32.xlu0 %v908, 64
        %v919 = vpop.permute.xlu0 %918
        %920 = vrot.lane.b32.xlu0 %v911, 64
        %v921 = vpop.permute.xlu0 %920
        %v922 = vmul.f32 %v915, 0.5
        %v923 = vmul.f32 %v917, 0.5
        %v924 = vmul.f32 %v919, 0.5
        %v925 = vmul.f32 %v921, 0.5
        %v926 = vmul.f32 %v922, 1.442695
        %v927 = vpow.pop %v926
        %v928 = vmul.f32 %v923, 1.442695
        %v929 = vpow.pop %v928
        %v930 = vmul.f32 %v924, 1.442695
        %v931 = vpow.pop %v930
        %v932 = vmul.f32 %v925, 1.442695
        %v933 = vpow.pop %v932
        %v934 = vld [vmem:[%s338] sm:$0xff]
        %v935 = vld [vmem:[%s338 + $0x8] sm:$0xff]
        %v936 = vld [vmem:[%s338 + $0x10] sm:$0xff]
        %v937 = vld [vmem:[%s338 + $0x18] sm:$0xff]
        %v938 = vmul.f32 %v934, %v927
        %v939 = vmul.f32 %v935, %v929
        %v940 = vmul.f32 %v936, %v931
        %v941 = vmul.f32 %v937, %v933
        %v942 = vadd.f32 %v900, %v938
        %v943 = vadd.f32 %v903, %v939
        %v944 = vadd.f32 %v908, %v940
        %v945 = vadd.f32 %v911, %v941
        %v946 = vtanh.pop %v942
        %v947 = vtanh.pop %v943
        %v948 = vtanh.pop %v944
        %v949 = vtanh.pop %v945
        %vm950 = vcmask 64512
        %951 = vst.msk [vmem:[%s344] sm:$0xff] %vm950, %v946
        %952 = vst.msk [vmem:[%s344 + $0x8] sm:$0xff] %vm950, %v947
        %953 = vst.msk [vmem:[%s344 + $0x10] sm:$0xff] %vm950, %v948
        %954 = vst.msk [vmem:[%s344 + $0x18] sm:$0xff] %vm950, %v949
        %s955 = smul.u32 4, %s20
        %p956 = scmp.lt.s32.totalorder %s955, 7
        %s957 = scalar_select %p956, %s955, 7
        %s958 = smul.addr %s957, 8
        %s959 = scalar_lea.vmem %s8, %s958
        // Predicated region
        $region57: #{tpu_custom_call.1} parent=51 // pred_check
          %p960 = pneg %p216
        $region58: #{tpu_custom_call.1} parent=51 // pred_check_branch
          %962 = sbr.rel (%p960) target = $region60
        $region59: #{tpu_custom_call.1} parent=51 // pred_region
          %s963 = smul.u32 4, %s20
        $region60: #{tpu_custom_call.1} parent=51 // pred_fallthru
          _
      $region52: #{tpu_custom_call.1} parent=5 // pred_fallthru
        _
      %p964 = scmp.le.s32.totalorder 2, %s15
      // Predicated region
      $region61: #{tpu_custom_call.1} parent=5 // pred_check
        %p965 = pneg %p964
      $region62: #{tpu_custom_call.1} parent=5 // pred_check_branch
        %967 = sbr.rel (%p965) target = $region64
      $region63: #{tpu_custom_call.1} parent=5 // pred_region
        %s968 = ssub.s32 %s15, 2
        // Predicated region
        $region65: #{tpu_custom_call.1} parent=63 // pred_check
          %p969 = pneg %p222
        $region66: #{tpu_custom_call.1} parent=63 // pred_check_branch
          %971 = sbr.rel (%p969) target = $region68
        $region67: #{tpu_custom_call.1} parent=63 // pred_region
          %s972 = smul.u32 4, %s21
          %p973 = scmp.lt.s32.totalorder %s972, 7
          %s974 = scalar_select %p973, %s972, 7
          %s975 = smul.addr %s974, 8
          %s976 = scalar_lea.vmem %s8, %s975
        $region68: #{tpu_custom_call.1} parent=63 // pred_fallthru
          _
      $region64: #{tpu_custom_call.1} parent=5 // pred_fallthru
        _
    $region6: #{tpu_custom_call.1} parent=1 // loop_footer
      %s19 = sadd.s32 1, %s15
    $region7: #{tpu_custom_call.1} parent=1 // loop_footer_branch
      %14 = sbr.rel target = $region3
    $region8: #{tpu_custom_call.1} parent=1 // loop_exit
      _
    %977 = vsyncpa [#allocation3], 1
    %s978 = scalar_lea.sflag [#allocation3], 1
    %979 = vsyncpa %s978, 1

</llo_original>
